<compile_context>
chip_gen: v7x
topology: tpu7x:2x2x1
jax: 0.10.0
libtpu: 0.0.40
codegen_flags: <defaults>
</compile_context>

<pallas_src>
import functools

import jax
import jax.numpy as jnp
import numpy as np
from jax.experimental import pallas as pl
from jax.experimental.pallas import tpu as pltpu


def _round_up(x, m):
    return ((x + m - 1) // m) * m


def _cdiv(a, b):
    return (a + b - 1) // b


def _vmem_budget_bytes():
    """~75% of this chip's physical VMEM (v5e/v6e: 128 MiB, v7x: 64 MiB)."""
    cap = 64 * 1024 * 1024  # v7x-safe default if the query is unavailable
    try:
        cap = int(getattr(pltpu.get_tpu_info(), "vmem_capacity_bytes", cap))
    except Exception:
        pass
    return int(cap * 0.75)


# --------------------------- kernels ---------------------------------------

def _mm_kernel(a_ref, w_ref, o_ref):
    """K fully resident: one fat MXU matmul per (M,Co) tile, f32 accumulation."""
    o_ref[...] = jnp.dot(a_ref[...], w_ref[...],
                         preferred_element_type=jnp.float32).astype(o_ref.dtype)


def _mm_acc_kernel(a_ref, w_ref, o_ref, acc_ref):
    """K split over reduction grid axis 2 ('arbitrary'): f32 VMEM accumulator."""
    k = pl.program_id(2)

    @pl.when(k == 0)
    def _():
        acc_ref[...] = jnp.zeros_like(acc_ref)

    acc_ref[...] += jnp.dot(a_ref[...], w_ref[...],
                            preferred_element_type=jnp.float32)

    @pl.when(k == pl.num_programs(2) - 1)
    def _():
        o_ref[...] = acc_ref[...].astype(o_ref.dtype)


# --------------------------- tiling heuristic --------------------------------

def _pick_tiles(M, K, Co, a_bytes, want_tm):
    Kp = _round_up(K, 128)
    Cop = _round_up(Co, 128)
    budget = _vmem_budget_bytes()

    # Co tile: keep the whole weight slab resident when it is small so the weight
    # block index never changes across the grid (weights DMA'd exactly once).
    if Kp * Cop * a_bytes <= 8 * 1024 * 1024:
        tco = Cop
    elif Cop % 256 == 0:
        tco = 256  # full MXU width on v6e/v7x (2x256x256)
    else:
        tco = 128

    tm = max(8, (min(want_tm, _round_up(M, 8)) // 8) * 8)
    tk = Kp

    def footprint(tm_, tco_, tk_, nk_):
        pat = 2 * tm_ * tk_ * a_bytes          # double-buffered patches
        wgt = 2 * tk_ * tco_ * a_bytes         # double-buffered weights
        out = 2 * tm_ * tco_ * 4               # double-buffered f32 output
        acc = tm_ * tco_ * 4 if nk_ > 1 else 0  # accumulator scratch
        tmp = tm_ * tco_ * 4                    # matmul result temporary
        return pat + wgt + out + acc + tmp

    # Shrink K first (preserves roofline-friendly M/Co tiles), then M, then Co.
    while footprint(tm, tco, tk, _cdiv(Kp, tk)) > budget:
        if tk > 512:
            tk = _round_up(tk // 2, 128)
        elif tm > 128:
            tm = max(128, (tm // 2 // 8) * 8)
        elif tk > 128:
            tk = _round_up(tk // 2, 128)
        elif tco > 128:
            tco = 128
        else:
            break

    # Grid occupancy (software pipelining / v7x dual-TC): several steps if we can
    # get them without dropping the MXU row tile below 128.
    def steps(tm_, tco_, tk_):
        return _cdiv(M, tm_) * _cdiv(Cop, tco_) * _cdiv(Kp, tk_)

    while steps(tm, tco, tk) < 8 and tm > 128:
        tm = max(128, (tm // 2 // 8) * 8)

    return tm, tco, tk, budget


# --------------------------- forward ----------------------------------------

def t_transition_forward(x_nchw, params, eps=1e-5, *, tile_m=512,
                         mxu_dtype=jnp.bfloat16, out_dtype=jnp.float32,
                         nchw_out=True):
    """x_nchw: (N, C, H, W) f32 (PyTorch layout). Returns (N, Co, H/2, W/2)."""
    gamma, beta, run_mean, run_var, w_conv = params
    N, C, H, W = x_nchw.shape
    assert H % 2 == 0 and W % 2 == 0
    Ho, Wo = H // 2, W // 2
    Co = w_conv.shape[0]
    K = 16 * C                      # 4x4 taps * C input channels
    M = N * Ho * Wo

    a_bytes = np.dtype(mxu_dtype).itemsize
    tm, tco, tk, vmem_budget = _pick_tiles(M, K, Co, a_bytes, tile_m)

    Mp = _round_up(M, tm)
    Kpad = _round_up(K, tk)
    Copad = _round_up(Co, tco)
    nk = Kpad // tk

    # ---- eval-mode BN folded + ReLU, applied in the wrapper in f32 ----
    scale = (gamma / jnp.sqrt(run_var + eps)).astype(jnp.float32)
    shift = (beta - run_mean * scale).astype(jnp.float32)
    x = jnp.transpose(x_nchw, (0, 2, 3, 1)).astype(jnp.float32)        # NHWC
    act = jnp.maximum(x * scale + shift, 0.0).astype(mxu_dtype)
    # The conv zero-pads the *post-activation* tensor -> literal zero halo is exact.
    ap = jnp.pad(act, ((0, 0), (1, 1), (1, 1), (0, 0)))

    # ---- im2col for kernel=4 / stride=2: 16 strided slices, channel concat ----
    cols = [ap[:, kh:kh + 2 * Ho:2, kw:kw + 2 * Wo:2, :]
            for kh in range(4) for kw in range(4)]                     # each (N,Ho,Wo,C)
    patches = jnp.concatenate(cols, axis=-1).reshape(M, K)             # (M, 16C), bf16
    patches = jnp.pad(patches, ((0, Mp - M), (0, Kpad - K)))

    # Weights: (Co, C, kh, kw) -> (kh, kw, c)-major rows, matching patch ordering.
    w2 = jnp.transpose(w_conv, (2, 3, 1, 0)).reshape(K, Co)
    w2 = jnp.pad(w2, ((0, Kpad - K), (0, Copad - Co))).astype(mxu_dtype)

    if nk == 1:
        grid = (Mp // tm, Copad // tco)
        in_specs = [pl.BlockSpec((tm, Kpad), lambda i, j: (i, 0)),
                    pl.BlockSpec((Kpad, tco), lambda i, j: (0, j))]
        out_specs = pl.BlockSpec((tm, tco), lambda i, j: (i, j))
        kernel = _mm_kernel
        scratch = []
        dims = ("parallel", "parallel")
    else:
        grid = (Mp // tm, Copad // tco, nk)
        in_specs = [pl.BlockSpec((tm, tk), lambda i, j, k: (i, k)),
                    pl.BlockSpec((tk, tco), lambda i, j, k: (k, j))]
        out_specs = pl.BlockSpec((tm, tco), lambda i, j, k: (i, j))
        kernel = _mm_acc_kernel
        scratch = [pltpu.VMEM((tm, tco), jnp.float32)]
        dims = ("parallel", "parallel", "arbitrary")

    out = pl.pallas_call(
        kernel,
        out_shape=jax.ShapeDtypeStruct((Mp, Copad), out_dtype),
        grid_spec=pltpu.PrefetchScalarGridSpec(
            num_scalar_prefetch=0,
            grid=grid,
            in_specs=in_specs,
            out_specs=out_specs,
            scratch_shapes=scratch),
        compiler_params=pltpu.CompilerParams(
            dimension_semantics=dims,
            vmem_limit_bytes=vmem_budget),
    )(patches, w2)

    out = out[:M, :Co].reshape(N, Ho, Wo, Co)
    if nchw_out:
        out = jnp.transpose(out, (0, 3, 1, 2))   # match the PyTorch module (NCHW)
    return out


# --------------------------- reference & test --------------------------------

def _reference(x_nchw, params, eps=1e-5):
    """Pure-JAX reference: eval-mode BN -> ReLU -> Conv2d(4, stride=2, pad=1)."""
    gamma, beta, run_mean, run_var, w_conv = params
    scale = gamma / jnp.sqrt(run_var + eps)
    shift = beta - run_mean * scale
    a = jnp.maximum(x_nchw * scale[None, :, None, None]
                    + shift[None, :, None, None], 0.0)
    return jax.lax.conv_general_dilated(
        a, w_conv, window_strides=(2, 2), padding=((1, 1), (1, 1)),
        dimension_numbers=("NCHW", "OIHW", "NCHW"))


if __name__ == "__main__":
    key = jax.random.PRNGKey(0)
    k_x, k_g, k_b, k_m, k_v, k_w = jax.random.split(key, 6)

    N, C, H, W = 2, 4, 16, 16     # nChannels = 4
    Co = 8                        # nOutChannels (even, as required by Tconv3x3)

    x = jax.random.normal(k_x, (N, C, H, W), dtype=jnp.float32)

    # Deterministic synthetic parameters (shapes from the module's __init__).
    gamma = jax.random.uniform(k_g, (C,), jnp.float32, 0.5, 1.5)
    beta = 0.1 * jax.random.normal(k_b, (C,), jnp.float32)
    run_mean = 0.1 * jax.random.normal(k_m, (C,), jnp.float32)
    run_var = jax.random.uniform(k_v, (C,), jnp.float32, 0.5, 1.5)

    fan_in = C * 4 * 4
    bound = 1.0 / np.sqrt(fan_in)
    w_conv = jax.random.uniform(k_w, (Co, C, 4, 4), jnp.float32, -bound, bound)

    params = (gamma, beta, run_mean, run_var, w_conv)

    ref = _reference(x, params)

    # Exact-math check: f32 MXU operands (verifies indexing / weight folding).
    fwd_f32 = jax.jit(functools.partial(t_transition_forward,
                                        mxu_dtype=jnp.float32))
    out_f32 = jax.block_until_ready(fwd_f32(x, params))
    assert out_f32.shape == (N, Co, H // 2, W // 2)
    np.testing.assert_allclose(np.asarray(out_f32), np.asarray(ref),
                               rtol=1e-4, atol=1e-4)

    # Production path: bf16 patches/weights, f32 accumulation (looser tolerance).
    fwd_bf16 = jax.jit(functools.partial(t_transition_forward))
    out_bf16 = jax.block_until_ready(fwd_bf16(x, params))
    np.testing.assert_allclose(np.asarray(out_bf16), np.asarray(ref),
                               rtol=3e-2, atol=3e-2)

    print("KERNEL_OK")
</pallas_src>

<mosaic_0001>
module attributes {stable_mosaic.version = 11 : i64} {
  func.func @_mm_kernel(%arg0: i32, %arg1: i32, %arg2: memref<128x128xf32, #tpu.memory_space<vmem>>, %arg3: memref<128x128xf32, #tpu.memory_space<vmem>>, %arg4: memref<128x128xf32, #tpu.memory_space<vmem>>) attributes {dimension_semantics = [#tpu.dimension_semantics<parallel>, #tpu.dimension_semantics<parallel>], iteration_bounds = array<i64: 1, 1>, scalar_prefetch = 0 : i64, scratch_operands = 0 : i64, tpu.core_type = #tpu.core_type<tc>, window_params = [{transform_indices = @transform_0, window_bounds = array<i64: 128, 128>}, {transform_indices = @transform_1, window_bounds = array<i64: 128, 128>}, {transform_indices = @transform_2, window_bounds = array<i64: 128, 128>}]} {
    %c0 = arith.constant 0 : index
    %c0_0 = arith.constant 0 : index
    %0 = vector.load %arg2[%c0, %c0_0] : memref<128x128xf32, #tpu.memory_space<vmem>>, vector<128x128xf32>
    %c0_1 = arith.constant 0 : index
    %c0_2 = arith.constant 0 : index
    %1 = vector.load %arg3[%c0_1, %c0_2] : memref<128x128xf32, #tpu.memory_space<vmem>>, vector<128x128xf32>
    %cst = arith.constant dense<0.000000e+00> : vector<128x128xf32>
    %2 = tpu.matmul %0, %1, %cst {dimension_numbers = #tpu.dot_dimension_numbers<[1], [0], [0], [1], [0, 0, 1, 1], [], []>} : vector<128x128xf32>, vector<128x128xf32>, vector<128x128xf32> -> vector<128x128xf32>
    %c0_3 = arith.constant 0 : index
    %c0_4 = arith.constant 0 : index
    %3 = vector.load %arg4[%c0_3, %c0_4] : memref<128x128xf32, #tpu.memory_space<vmem>>, vector<128x128xf32>
    tpu.vector_store %arg4[%c0_3, %c0_4], %2 {strides = array<i32>} : memref<128x128xf32, #tpu.memory_space<vmem>>, vector<128x128xf32>,
    return
  }
  func.func @transform_0(%arg0: i32, %arg1: i32) -> (i32, i32) {
    %c0_i32 = arith.constant 0 : i32
    %c0_i32_0 = arith.constant 0 : i32
    return %arg0, %c0_i32 : i32, i32
  }
  func.func @transform_1(%arg0: i32, %arg1: i32) -> (i32, i32) {
    %c0_i32 = arith.constant 0 : i32
    %c0_i32_0 = arith.constant 0 : i32
    return %c0_i32, %arg1 : i32, i32
  }
  func.func @transform_2(%arg0: i32, %arg1: i32) -> (i32, i32) {
    %c0_i32 = arith.constant 0 : i32
    return %arg0, %arg1 : i32, i32
  }
}

</mosaic_0001>

<llo_original>
// kernel: t_transition_forward.1
$region0: #{t_transition_forward.1}
  #allocation0 [shape = 'u32[]', space=smem, size = 0x4, offset = 0x4, fixed_abs, tag = 'smem constant byte address 0x4 - core index']
  #allocation1 [shape = 'u32[144,128]{1,0:T(1,128)}', space=vmem, size = 0x12000, scoped, tag = 'internal scratch']
  %s0 = inlined_call_operand.vmem [shape: f32[128,128], index: 0, kind: input, shape index: {}]
  %s1 = inlined_call_operand.vmem [shape: f32[128,128], index: 1, kind: input, shape index: {}]
  %s2 = inlined_call_operand.vmem [shape: f32[128,128], index: 2, kind: output, shape index: {}]
  %s3 = sld [smem:[#allocation0]]
  $region18: #{t_transition_forward.1} parent=0
    _
  %s5 = ssub.s32 1, %s3
  %s6 = scalar_select 0, %s5, %s3
  // Predicated region
  $region2: #{t_transition_forward.1} parent=0 // pred_check
    _
  $region3: #{t_transition_forward.1} parent=0 // pred_check_branch
    %8 = sbr.rel (0) target = $region5
  $region4: #{t_transition_forward.1} parent=0 // pred_region
    _
  $region5: #{t_transition_forward.1} parent=0 // pred_fallthru
    _
  // Predicated region
  $region6: #{t_transition_forward.1} parent=0 // pred_check
    _
  $region7: #{t_transition_forward.1} parent=0 // pred_check_branch
    %10 = sbr.rel (0) target = $region9
  $region8: #{t_transition_forward.1} parent=0 // pred_region
    _
  $region9: #{t_transition_forward.1} parent=0 // pred_fallthru
    _
  %v11 = vld [vmem:[%s0] sm:$0xff]
  %v12 = vld [vmem:[%s0 + $0x8] sm:$0xff]
  %v13 = vld [vmem:[%s0 + $0x10] sm:$0xff]
  %v14 = vld [vmem:[%s0 + $0x18] sm:$0xff]
  %v15 = vld [vmem:[%s0 + $0x20] sm:$0xff]
  %v16 = vld [vmem:[%s0 + $0x28] sm:$0xff]
  %v17 = vld [vmem:[%s0 + $0x30] sm:$0xff]
  %v18 = vld [vmem:[%s0 + $0x38] sm:$0xff]
  %v19 = vld [vmem:[%s0 + $0x40] sm:$0xff]
  %v20 = vld [vmem:[%s0 + $0x48] sm:$0xff]
  %v21 = vld [vmem:[%s0 + $0x50] sm:$0xff]
  %v22 = vld [vmem:[%s0 + $0x58] sm:$0xff]
  %v23 = vld [vmem:[%s0 + $0x60] sm:$0xff]
  %v24 = vld [vmem:[%s0 + $0x68] sm:$0xff]
  %v25 = vld [vmem:[%s0 + $0x70] sm:$0xff]
  %v26 = vld [vmem:[%s0 + $0x78] sm:$0xff]
  %v27 = vld [vmem:[%s1] sm:$0xff]
  %v28 = vld [vmem:[%s1 + $0x8] sm:$0xff]
  %v29 = vld [vmem:[%s1 + $0x10] sm:$0xff]
  %v30 = vld [vmem:[%s1 + $0x18] sm:$0xff]
  %v31 = vld [vmem:[%s1 + $0x20] sm:$0xff]
  %v32 = vld [vmem:[%s1 + $0x28] sm:$0xff]
  %v33 = vld [vmem:[%s1 + $0x30] sm:$0xff]
  %v34 = vld [vmem:[%s1 + $0x38] sm:$0xff]
  %v35 = vld [vmem:[%s1 + $0x40] sm:$0xff]
  %v36 = vld [vmem:[%s1 + $0x48] sm:$0xff]
  %v37 = vld [vmem:[%s1 + $0x50] sm:$0xff]
  %v38 = vld [vmem:[%s1 + $0x58] sm:$0xff]
  %v39 = vld [vmem:[%s1 + $0x60] sm:$0xff]
  %v40 = vld [vmem:[%s1 + $0x68] sm:$0xff]
  %v41 = vld [vmem:[%s1 + $0x70] sm:$0xff]
  %v42 = vld [vmem:[%s1 + $0x78] sm:$0xff]
  %43 = vmatprep.subr.mxu0 0.0
  %44 = vmatpush1.msra.mxu0 %v27
  %45 = vmatprep.subr.mxu0 0.0
  %46 = vmatpush1.msra.mxu0 %v28
  %47 = vmatprep.subr.mxu0 0.0
  %48 = vmatpush1.msra.mxu0 %v29
  %49 = vmatprep.subr.mxu0 0.0
  %50 = vmatpush1.msra.mxu0 %v30
  %51 = vmatprep.subr.mxu0 0.0
  %52 = vmatpush1.msra.mxu0 %v31
  %53 = vmatprep.subr.mxu0 0.0
  %54 = vmatpush1.msra.mxu0 %v32
  %55 = vmatprep.subr.mxu0 0.0
  %56 = vmatpush1.msra.mxu0 %v33
  %57 = vmatprep.subr.mxu0 0.0
  %58 = vmatpush1.msra.mxu0 %v34
  %59 = vmatprep.subr.mxu0 0.0
  %60 = vmatpush1.msra.mxu0 %v35
  %61 = vmatprep.subr.mxu0 0.0
  %62 = vmatpush1.msra.mxu0 %v36
  %63 = vmatprep.subr.mxu0 0.0
  %64 = vmatpush1.msra.mxu0 %v37
  %65 = vmatprep.subr.mxu0 0.0
  %66 = vmatpush1.msra.mxu0 %v38
  %67 = vmatprep.subr.mxu0 0.0
  %68 = vmatpush1.msra.mxu0 %v39
  %69 = vmatprep.subr.mxu0 0.0
  %70 = vmatpush1.msra.mxu0 %v40
  %71 = vmatprep.subr.mxu0 0.0
  %72 = vmatpush1.msra.mxu0 %v41
  %73 = vmatprep.subr.mxu0 0.0
  %74 = vmatpush1.msra.mxu0 %v42
  %75 = vmatprep.subr.mxu0 0.0
  %76 = vmatpush1.msra.mxu0 0.0
  %77 = vmatprep.subr.mxu0 0.0
  %78 = vmatpush1.msra.mxu0 0.0
  %79 = vmatprep.subr.mxu0 0.0
  %80 = vmatpush1.msra.mxu0 0.0
  %81 = vmatprep.subr.mxu0 0.0
  %82 = vmatpush1.msra.mxu0 0.0
  %83 = vmatprep.subr.mxu0 0.0
  %84 = vmatpush1.msra.mxu0 0.0
  %85 = vmatprep.subr.mxu0 0.0
  %86 = vmatpush1.msra.mxu0 0.0
  %87 = vmatprep.subr.mxu0 0.0
  %88 = vmatpush1.msra.mxu0 0.0
  %89 = vmatprep.subr.mxu0 0.0
  %90 = vmatpush1.msra.mxu0 0.0
  %91 = vmatprep.subr.mxu0 0.0
  %92 = vmatpush1.msra.mxu0 0.0
  %93 = vmatprep.subr.mxu0 0.0
  %94 = vmatpush1.msra.mxu0 0.0
  %95 = vmatprep.subr.mxu0 0.0
  %96 = vmatpush1.msra.mxu0 0.0
  %97 = vmatprep.subr.mxu0 0.0
  %98 = vmatpush1.msra.mxu0 0.0
  %99 = vmatprep.subr.mxu0 0.0
  %100 = vmatpush1.msra.mxu0 0.0
  %101 = vmatprep.subr.mxu0 0.0
  %102 = vmatpush1.msra.mxu0 0.0
  %103 = vmatprep.subr.mxu0 0.0
  %104 = vmatpush1.msra.mxu0 0.0
  %105 = vmatprep.subr.mxu0 0.0
  %106 = vmatpush1.msra.mxu0 0.0
  %107 = vmatprep.mubr.f32.mxu0 0.0
  %108 = vmatmul.mubr.f32.gmra.mrb[0].mxu0 %v11
  %v109 = vpop.f32.mrb[0].mxu0
  %v110 = vadd.f32 0.0, %v109
  %v111 = vpop.f32.mrb[0].mxu0
  %112 = vmatprep.mubr.f32.mxu0 0.0
  %113 = vmatmul.mubr.f32.gmra.mrb[0].mxu0 %v12
  %v114 = vpop.f32.mrb[0].mxu0
  %v115 = vadd.f32 0.0, %v114
  %v116 = vpop.f32.mrb[0].mxu0
  %117 = vmatprep.mubr.f32.mxu0 0.0
  %118 = vmatmul.mubr.f32.gmra.mrb[0].mxu0 %v13
  %v119 = vpop.f32.mrb[0].mxu0
  %v120 = vadd.f32 0.0, %v119
  %v121 = vpop.f32.mrb[0].mxu0
  %122 = vmatprep.mubr.f32.mxu0 0.0
  %123 = vmatmul.mubr.f32.gmra.mrb[0].mxu0 %v14
  %v124 = vpop.f32.mrb[0].mxu0
  %v125 = vadd.f32 0.0, %v124
  %v126 = vpop.f32.mrb[0].mxu0
  %127 = vmatprep.mubr.f32.mxu0 0.0
  %128 = vmatmul.mubr.f32.gmra.mrb[0].mxu0 %v15
  %v129 = vpop.f32.mrb[0].mxu0
  %v130 = vadd.f32 0.0, %v129
  %v131 = vpop.f32.mrb[0].mxu0
  %132 = vmatprep.mubr.f32.mxu0 0.0
  %133 = vmatmul.mubr.f32.gmra.mrb[0].mxu0 %v16
  %v134 = vpop.f32.mrb[0].mxu0
  %v135 = vadd.f32 0.0, %v134
  %v136 = vpop.f32.mrb[0].mxu0
  %137 = vmatprep.mubr.f32.mxu0 0.0
  %138 = vmatmul.mubr.f32.gmra.mrb[0].mxu0 %v17
  %v139 = vpop.f32.mrb[0].mxu0
  %v140 = vadd.f32 0.0, %v139
  %v141 = vpop.f32.mrb[0].mxu0
  %142 = vmatprep.mubr.f32.mxu0 0.0
  %143 = vmatmul.mubr.f32.gmra.mrb[0].mxu0 %v18
  %v144 = vpop.f32.mrb[0].mxu0
  %v145 = vadd.f32 0.0, %v144
  %v146 = vpop.f32.mrb[0].mxu0
  %147 = vmatprep.mubr.f32.mxu0 0.0
  %148 = vmatmul.mubr.f32.gmra.mrb[0].mxu0 %v19
  %v149 = vpop.f32.mrb[0].mxu0
  %v150 = vadd.f32 0.0, %v149
  %v151 = vpop.f32.mrb[0].mxu0
  %152 = vmatprep.mubr.f32.mxu0 0.0
  %153 = vmatmul.mubr.f32.gmra.mrb[0].mxu0 %v20
  %v154 = vpop.f32.mrb[0].mxu0
  %v155 = vadd.f32 0.0, %v154
  %v156 = vpop.f32.mrb[0].mxu0
  %157 = vmatprep.mubr.f32.mxu0 0.0
  %158 = vmatmul.mubr.f32.gmra.mrb[0].mxu0 %v21
  %v159 = vpop.f32.mrb[0].mxu0
  %v160 = vadd.f32 0.0, %v159
  %v161 = vpop.f32.mrb[0].mxu0
  %162 = vmatprep.mubr.f32.mxu0 0.0
  %163 = vmatmul.mubr.f32.gmra.mrb[0].mxu0 %v22
  %v164 = vpop.f32.mrb[0].mxu0
  %v165 = vadd.f32 0.0, %v164
  %v166 = vpop.f32.mrb[0].mxu0
  %167 = vmatprep.mubr.f32.mxu0 0.0
  %168 = vmatmul.mubr.f32.gmra.mrb[0].mxu0 %v23
  %v169 = vpop.f32.mrb[0].mxu0
  %v170 = vadd.f32 0.0, %v169
  %v171 = vpop.f32.mrb[0].mxu0
  %172 = vmatprep.mubr.f32.mxu0 0.0
  %173 = vmatmul.mubr.f32.gmra.mrb[0].mxu0 %v24
  %v174 = vpop.f32.mrb[0].mxu0
  %v175 = vadd.f32 0.0, %v174
  %v176 = vpop.f32.mrb[0].mxu0
  %177 = vmatprep.mubr.f32.mxu0 0.0
  %178 = vmatmul.mubr.f32.gmra.mrb[0].mxu0 %v25
  %v179 = vpop.f32.mrb[0].mxu0
  %v180 = vadd.f32 0.0, %v179
  %v181 = vpop.f32.mrb[0].mxu0
  %182 = vmatprep.mubr.f32.mxu0 0.0
  %183 = vmatmul.mubr.f32.gmra.mrb[0].mxu0 %v26
  %v184 = vpop.f32.mrb[0].mxu0
  %v185 = vadd.f32 0.0, %v184
  %v186 = vpop.f32.mrb[0].mxu0
  %187 = vdwg.mxu0
  %188 = vst [vmem:[%s2] sm:$0xff] %v110
  %189 = vst [vmem:[%s2 + $0x8] sm:$0xff] %v115
  %190 = vst [vmem:[%s2 + $0x10] sm:$0xff] %v120
  %191 = vst [vmem:[%s2 + $0x18] sm:$0xff] %v125
  %192 = vst [vmem:[%s2 + $0x20] sm:$0xff] %v130
  %193 = vst [vmem:[%s2 + $0x28] sm:$0xff] %v135
  %194 = vst [vmem:[%s2 + $0x30] sm:$0xff] %v140
  %195 = vst [vmem:[%s2 + $0x38] sm:$0xff] %v145
  %196 = vst [vmem:[%s2 + $0x40] sm:$0xff] %v150
  %197 = vst [vmem:[%s2 + $0x48] sm:$0xff] %v155
  %198 = vst [vmem:[%s2 + $0x50] sm:$0xff] %v160
  %199 = vst [vmem:[%s2 + $0x58] sm:$0xff] %v165
  %200 = vst [vmem:[%s2 + $0x60] sm:$0xff] %v170
  %201 = vst [vmem:[%s2 + $0x68] sm:$0xff] %v175
  %202 = vst [vmem:[%s2 + $0x70] sm:$0xff] %v180
  %203 = vst [vmem:[%s2 + $0x78] sm:$0xff] %v185
  // Predicated region
  $region10: #{t_transition_forward.1} parent=0 // pred_check
    _
  $region11: #{t_transition_forward.1} parent=0 // pred_check_branch
    %205 = sbr.rel (0) target = $region13
  $region12: #{t_transition_forward.1} parent=0 // pred_region
    _
  $region13: #{t_transition_forward.1} parent=0 // pred_fallthru
    _
  // Predicated region
  $region14: #{t_transition_forward.1} parent=0 // pred_check
    _
  $region15: #{t_transition_forward.1} parent=0 // pred_check_branch
    %207 = sbr.rel (0) target = $region17
  $region16: #{t_transition_forward.1} parent=0 // pred_region
    _
  $region17: #{t_transition_forward.1} parent=0 // pred_fallthru
    _

</llo_original>
